<compile_context>
chip_gen: v7x
topology: tpu7x:2x2x1
jax: 0.10.0
libtpu: 0.0.40
codegen_flags: <defaults>
</compile_context>

<pallas_src>
import jax
import jax.numpy as jnp
from jax import lax
from jax.experimental import pallas as pl
from jax.experimental.pallas import tpu as pltpu

NEG_SLOPE = 0.01    # F.leaky_relu default negative_slope
MASK_VAL = -1e30    # finite "-inf" (keeps the online-softmax max arithmetic NaN-free)


def _round_up(x, m):
    return ((x + m - 1) // m) * m


# -----------------------------------------------------------------------------
# Kernel 1: projection  z = h @ w  (bf16 MXU, f32 accumulate)  +  logit halves
#           ea[0, s] = a_src . z_s ,  ea[1, s] = a_dst . z_s
# -----------------------------------------------------------------------------
def proj_kernel(h_ref, w_ref, a_ref, z_ref, ea_ref):
    z = jnp.dot(h_ref[...], w_ref[...], preferred_element_type=jnp.float32)  # (ts, Dp) f32
    z_ref[...] = z.astype(z_ref.dtype)                                       # bf16 for the alpha@z matmul
    # (2, Dp) x (ts, Dp) contracting Dp -> (2, ts): one small matmul instead of
    # a cross-lane VALU/XLU reduction plus an explicit transpose.
    ea_ref[...] = lax.dot_general(a_ref[...], z, (((1,), (1,)), ((), ())),
                                  preferred_element_type=jnp.float32)


# -----------------------------------------------------------------------------
# Kernel 2: masked softmax over src neighbours + weighted aggregation,
#           flash-style online softmax over the src-tile grid axis.
# -----------------------------------------------------------------------------
def attn_kernel(ed_ref, es_ref, z_ref, adj_ref, out_ref, m_ref, l_ref, acc_ref):
    j = pl.program_id(1)

    @pl.when(j == 0)
    def _():
        m_ref[...] = jnp.full_like(m_ref, MASK_VAL)
        l_ref[...] = jnp.zeros_like(l_ref)
        acc_ref[...] = jnp.zeros_like(acc_ref)

    adj = adj_ref[...].astype(jnp.float32)                        # (td, ts) 0/1
    # e[d, s] = leaky_relu(a_src.z_s + a_dst.z_d)
    e = ed_ref[...] + es_ref[...]                                 # (td,1)+(1,ts) -> (td,ts)
    e = jnp.where(e > 0, e, NEG_SLOPE * e)
    e = jnp.where(adj > 0, e, MASK_VAL)

    m_prev = m_ref[...]
    m_new = jnp.maximum(m_prev, jnp.max(e, axis=-1, keepdims=True))
    corr = jnp.exp(m_prev - m_new)
    p = jnp.exp(e - m_new) * adj          # adj-multiply keeps fully-masked tiles exactly 0
    l_ref[...] = corr * l_ref[...] + jnp.sum(p, axis=-1, keepdims=True)
    acc_ref[...] = corr * acc_ref[...] + jnp.dot(
        p.astype(z_ref.dtype), z_ref[...], preferred_element_type=jnp.float32)
    m_ref[...] = m_new

    @pl.when(j == pl.num_programs(1) - 1)
    def _():
        denom = jnp.maximum(l_ref[...], 1e-30)                    # empty-mailbox guard
        out_ref[...] = (acc_ref[...]
                        * pl.reciprocal(denom, approx=True)).astype(out_ref.dtype)


# -----------------------------------------------------------------------------
# Wrapper
# -----------------------------------------------------------------------------
def gat_forward(h, w_fc, attn_w, dst_idx, adj, *, tile_d=128, tile_s=128):
    """GATLayer forward.

    h       : (Ns, in_dim)   source-layer node features
    w_fc    : (in_dim, out)  fc.weight pre-transposed so z = h @ w_fc
    attn_w  : (1, 2*out)     attn_fc.weight (torch layout)
    dst_idx : (Nd,)          src index of each dst node ("indices" from topk(A==B))
    adj     : (Nd, Ns)       block adjacency (dst d attends over its src neighbours)
    returns : (Nd, out) float32
    """
    n_src, in_dim = h.shape
    out_dim = w_fc.shape[1]
    n_dst = dst_idx.shape[0]

    dp = _round_up(out_dim, 128)            # lane-dense feature dim (full MXU N width)
    ns_p = _round_up(n_src, tile_s)
    nd_p = _round_up(n_dst, tile_d)

    # ---- pad / cast host-side (cheap XLA ops) ----
    h_p = jnp.zeros((ns_p, in_dim), jnp.bfloat16).at[:n_src].set(h.astype(jnp.bfloat16))
    w_p = jnp.zeros((in_dim, dp), jnp.bfloat16).at[:, :out_dim].set(w_fc.astype(jnp.bfloat16))
    a_cat = jnp.zeros((2, dp), jnp.float32)
    a_cat = a_cat.at[0, :out_dim].set(attn_w[0, :out_dim].astype(jnp.float32))   # a_src
    a_cat = a_cat.at[1, :out_dim].set(attn_w[0, out_dim:].astype(jnp.float32))   # a_dst
    adj_p = jnp.zeros((nd_p, ns_p), jnp.int8).at[:n_dst, :n_src].set(
        (adj != 0).astype(jnp.int8))
    idx_p = jnp.zeros((nd_p,), jnp.int32).at[:n_dst].set(dst_idx.astype(jnp.int32))

    # ---- kernel 1: projection + per-node logit halves ----
    z_bf16, ea = pl.pallas_call(
        proj_kernel,
        out_shape=(jax.ShapeDtypeStruct((ns_p, dp), jnp.bfloat16),
                   jax.ShapeDtypeStruct((2, ns_p), jnp.float32)),
        grid_spec=pltpu.PrefetchScalarGridSpec(
            num_scalar_prefetch=0,
            grid=(ns_p // tile_s,),
            in_specs=[pl.BlockSpec((tile_s, in_dim), lambda i: (i, 0)),
                      pl.BlockSpec((in_dim, dp), lambda i: (0, 0)),
                      pl.BlockSpec((2, dp), lambda i: (0, 0))],
            out_specs=(pl.BlockSpec((tile_s, dp), lambda i: (i, 0)),
                       pl.BlockSpec((2, tile_s), lambda i: (0, i)))),
        compiler_params=pltpu.CompilerParams(dimension_semantics=("parallel",)),
    )(h_p, w_p, a_cat)

    # per-dst scalar logit half: a tiny Nd-element gather (plain JAX), replacing
    # the previous O(Nd*Ns) one-hot gather matrix + matmul.
    es_row = ea[0:1, :]                          # (1, Ns_p)   a_src . z_s
    ed_col = ea[1, idx_p][:, None]               # (Nd_p, 1)   a_dst . z_dst

    # ---- kernel 2: flash-style masked softmax + aggregation ----
    out_p = pl.pallas_call(
        attn_kernel,
        out_shape=jax.ShapeDtypeStruct((nd_p, dp), jnp.float32),
        grid_spec=pltpu.PrefetchScalarGridSpec(
            num_scalar_prefetch=0,
            grid=(nd_p // tile_d, ns_p // tile_s),
            in_specs=[pl.BlockSpec((tile_d, 1), lambda i, j: (i, 0)),        # e_dst scalars
                      pl.BlockSpec((1, tile_s), lambda i, j: (0, j)),        # e_src scalars
                      pl.BlockSpec((tile_s, dp), lambda i, j: (j, 0)),       # z (bf16)
                      pl.BlockSpec((tile_d, tile_s), lambda i, j: (i, j))],  # adj (int8)
            out_specs=pl.BlockSpec((tile_d, dp), lambda i, j: (i, 0)),
            scratch_shapes=[pltpu.VMEM((tile_d, 1), jnp.float32),    # running max m
                            pltpu.VMEM((tile_d, 1), jnp.float32),    # running denom l
                            pltpu.VMEM((tile_d, dp), jnp.float32)]), # running acc
        compiler_params=pltpu.CompilerParams(
            dimension_semantics=("parallel", "arbitrary")),
    )(ed_col, es_row, z_bf16, adj_p)

    return out_p[:n_dst, :out_dim]


def gat_reference(h, w_fc, attn_w, dst_idx, adj):
    """Pure-JAX f32 reference mirroring the DGL message passing."""
    out_dim = w_fc.shape[1]
    z = h @ w_fc
    a_src = attn_w[0, :out_dim]
    a_dst = attn_w[0, out_dim:]
    e = z[dst_idx] @ a_dst[:, None] + (z @ a_src[:, None]).T     # (Nd, Ns)
    e = jnp.where(e > 0, e, NEG_SLOPE * e)
    e = jnp.where(adj > 0, e, -jnp.inf)
    alpha = jax.nn.softmax(e, axis=-1)
    return alpha @ z


if __name__ == "__main__":
    in_dim, out_dim = 32, 16
    n_src, n_dst = 16, 8

    key = jax.random.PRNGKey(0)
    k_h, k_fc, k_attn, k_adj = jax.random.split(key, 4)

    # node features for layer `layer_id`
    h = jax.random.normal(k_h, (n_src, in_dim), dtype=jnp.float32)

    # xavier_normal_ with gain = calculate_gain('relu') = sqrt(2)
    gain = jnp.sqrt(2.0)
    fc_std = gain * jnp.sqrt(2.0 / (in_dim + out_dim))
    attn_std = gain * jnp.sqrt(2.0 / (1 + 2 * out_dim))
    fc_weight = fc_std * jax.random.normal(k_fc, (out_dim, in_dim), dtype=jnp.float32)   # torch (out,in)
    attn_weight = attn_std * jax.random.normal(k_attn, (1, 2 * out_dim), dtype=jnp.float32)
    w_fc = fc_weight.T                                                                   # (in, out)

    # destination-layer parent nids: the "indices" from topk(A == B)
    dst_idx = jnp.arange(n_dst, dtype=jnp.int32)

    # block adjacency (dst x src) with a guaranteed self edge so every mailbox is non-empty
    adj = (jax.random.uniform(k_adj, (n_dst, n_src)) < 0.5).astype(jnp.float32)
    adj = jnp.maximum(adj, jax.nn.one_hot(dst_idx, n_src, dtype=jnp.float32))

    out = gat_forward(h, w_fc, attn_weight, dst_idx, adj)
    out = jax.block_until_ready(out)

    # Reference uses inputs round-tripped through bf16 to match what the MXU is
    # fed; remaining diffs are bf16 z/p storage + approx reciprocal (<~1%).
    h_r = h.astype(jnp.bfloat16).astype(jnp.float32)
    w_r = w_fc.astype(jnp.bfloat16).astype(jnp.float32)
    ref = gat_reference(h_r, w_r, attn_weight, dst_idx, adj)

    assert out.shape == (n_dst, out_dim)
    assert jnp.allclose(out, ref, atol=2e-2, rtol=2e-2), "mismatch vs reference"

    print("KERNEL_OK")
</pallas_src>

<mosaic_0001>
module attributes {stable_mosaic.version = 11 : i64} {
  func.func @proj_kernel(%arg0: i32, %arg1: memref<128x32xbf16, #tpu.memory_space<vmem>>, %arg2: memref<32x128xbf16, #tpu.memory_space<vmem>>, %arg3: memref<2x128xf32, #tpu.memory_space<vmem>>, %arg4: memref<128x128xbf16, #tpu.memory_space<vmem>>, %arg5: memref<2x128xf32, #tpu.memory_space<vmem>>) attributes {dimension_semantics = [#tpu.dimension_semantics<parallel>], iteration_bounds = array<i64: 1>, scalar_prefetch = 0 : i64, scratch_operands = 0 : i64, tpu.core_type = #tpu.core_type<tc>, window_params = [{transform_indices = @transform_0, window_bounds = array<i64: 128, 32>}, {pipeline_mode = #tpu.pipeline_mode<synchronous>, transform_indices = @transform_1, window_bounds = array<i64: 32, 128>}, {pipeline_mode = #tpu.pipeline_mode<synchronous>, transform_indices = @transform_2, window_bounds = array<i64: 2, 128>}, {transform_indices = @transform_3, window_bounds = array<i64: 128, 128>}, {transform_indices = @transform_4, window_bounds = array<i64: 2, 128>}]} {
    %c0 = arith.constant 0 : index
    %c0_0 = arith.constant 0 : index
    %0 = vector.load %arg1[%c0, %c0_0] : memref<128x32xbf16, #tpu.memory_space<vmem>>, vector<128x32xbf16>
    %c0_1 = arith.constant 0 : index
    %c0_2 = arith.constant 0 : index
    %1 = vector.load %arg2[%c0_1, %c0_2] : memref<32x128xbf16, #tpu.memory_space<vmem>>, vector<32x128xbf16>
    %cst = arith.constant dense<0.000000e+00> : vector<128x128xf32>
    %2 = tpu.matmul %0, %1, %cst {dimension_numbers = #tpu.dot_dimension_numbers<[1], [0], [0], [1], [0, 0, 1, 1], [], []>} : vector<128x32xbf16>, vector<32x128xbf16>, vector<128x128xf32> -> vector<128x128xf32>
    %3 = arith.truncf %2 : vector<128x128xf32> to vector<128x128xbf16>
    %c0_3 = arith.constant 0 : index
    %c0_4 = arith.constant 0 : index
    %4 = vector.load %arg4[%c0_3, %c0_4] : memref<128x128xbf16, #tpu.memory_space<vmem>>, vector<128x128xbf16>
    tpu.vector_store %arg4[%c0_3, %c0_4], %3 {strides = array<i32>} : memref<128x128xbf16, #tpu.memory_space<vmem>>, vector<128x128xbf16>,
    %c0_5 = arith.constant 0 : index
    %c0_6 = arith.constant 0 : index
    %5 = vector.load %arg3[%c0_5, %c0_6] : memref<2x128xf32, #tpu.memory_space<vmem>>, vector<2x128xf32>
    %cst_7 = arith.constant dense<0.000000e+00> : vector<2x128xf32>
    %6 = tpu.matmul %5, %2, %cst_7 {dimension_numbers = #tpu.dot_dimension_numbers<[1], [1], [0], [0], [0, 0, 1, 0], [], []>} : vector<2x128xf32>, vector<128x128xf32>, vector<2x128xf32> -> vector<2x128xf32>
    %c0_8 = arith.constant 0 : index
    %c0_9 = arith.constant 0 : index
    %7 = vector.load %arg5[%c0_8, %c0_9] : memref<2x128xf32, #tpu.memory_space<vmem>>, vector<2x128xf32>
    tpu.vector_store %arg5[%c0_8, %c0_9], %6 {strides = array<i32>} : memref<2x128xf32, #tpu.memory_space<vmem>>, vector<2x128xf32>,
    return
  }
  func.func @transform_0(%arg0: i32) -> (i32, i32) {
    %c0_i32 = arith.constant 0 : i32
    %c0_i32_0 = arith.constant 0 : i32
    return %arg0, %c0_i32 : i32, i32
  }
  func.func @transform_1(%arg0: i32) -> (i32, i32) {
    %c0_i32 = arith.constant 0 : i32
    %c0_i32_0 = arith.constant 0 : i32
    %c0_i32_1 = arith.constant 0 : i32
    return %c0_i32, %c0_i32_0 : i32, i32
  }
  func.func @transform_2(%arg0: i32) -> (i32, i32) {
    %c0_i32 = arith.constant 0 : i32
    %c0_i32_0 = arith.constant 0 : i32
    %c0_i32_1 = arith.constant 0 : i32
    return %c0_i32, %c0_i32_0 : i32, i32
  }
  func.func @transform_3(%arg0: i32) -> (i32, i32) {
    %c0_i32 = arith.constant 0 : i32
    %c0_i32_0 = arith.constant 0 : i32
    return %arg0, %c0_i32 : i32, i32
  }
  func.func @transform_4(%arg0: i32) -> (i32, i32) {
    %c0_i32 = arith.constant 0 : i32
    %c0_i32_0 = arith.constant 0 : i32
    return %c0_i32, %arg0 : i32, i32
  }
}

</mosaic_0001>

<llo_original>
// kernel: tpu_custom_call.1
$region0: #{tpu_custom_call.1}
  #allocation0 [shape = 'u32[]', space=smem, size = 0x4, offset = 0x4, fixed_abs, tag = 'smem constant byte address 0x4 - core index']
  #allocation1 [shape = 'u32[144,128]{1,0:T(1,128)}', space=vmem, size = 0x12000, scoped, tag = 'internal scratch']
  %s0 = inlined_call_operand.vmem [shape: bf16[128,32], index: 0, kind: input, shape index: {}]
  %s1 = inlined_call_operand.vmem [shape: bf16[32,128], index: 1, kind: input, shape index: {}]
  %s2 = inlined_call_operand.vmem [shape: f32[2,128], index: 2, kind: input, shape index: {}]
  %s3 = inlined_call_operand.hbm [shape: bf16[128,128], index: 3, kind: output, shape index: {0}]
  %s4 = inlined_call_operand.hbm [shape: f32[2,128], index: 4, kind: output, shape index: {1}]
  %5 = xla_tuple %s3, %s4
  %s6 = sld [smem:[#allocation0]]
  $region30: #{tpu_custom_call.1} parent=0
    _
  %s8 = ssub.s32 1, %s6
  %s9 = scalar_select 0, %s8, %s6
  $region1: #{tpu_custom_call.1} parent=0
    #allocation2 [shape = 'u8[32768]{0}', space=vmem, size = 0x8000, scoped, tag = 'output window, operand 0, single buffered']
    #allocation3 [shape = 's32[1]{0}', space=sflag, size = 0x4, scoped, tag = 'scoped memory for tpu_custom_call.1']
    #allocation4 [shape = 'u8[1024]{0}', space=vmem, size = 0x400, scoped, tag = 'output window, operand 1, single buffered']
    #allocation5 [shape = 's32[1]{0}', space=sflag, size = 0x4, scoped, tag = 'scoped memory for tpu_custom_call.1']
    %10 = vsyncpa [#allocation3], 0
    %11 = vsyncpa [#allocation5], 0
    // Predicated region
    $region2: #{tpu_custom_call.1} parent=1 // pred_check
      _
    $region3: #{tpu_custom_call.1} parent=1 // pred_check_branch
      %13 = sbr.rel (0) target = $region5
    $region4: #{tpu_custom_call.1} parent=1 // pred_region
      _
    $region5: #{tpu_custom_call.1} parent=1 // pred_fallthru
      _
    // Predicated region
    $region6: #{tpu_custom_call.1} parent=1 // pred_check
      _
    $region7: #{tpu_custom_call.1} parent=1 // pred_check_branch
      %15 = sbr.rel (0) target = $region9
    $region8: #{tpu_custom_call.1} parent=1 // pred_region
      _
    $region9: #{tpu_custom_call.1} parent=1 // pred_fallthru
      _
    // Predicated region
    $region10: #{tpu_custom_call.1} parent=1 // pred_check
      _
    $region11: #{tpu_custom_call.1} parent=1 // pred_check_branch
      %17 = sbr.rel (0) target = $region13
    $region12: #{tpu_custom_call.1} parent=1 // pred_region
      _
    $region13: #{tpu_custom_call.1} parent=1 // pred_fallthru
      _
    %v19 = vld [vmem:[%s0] sm:$0xf]
    %v20 = vld [vmem:[%s0 + $0x4] sm:$0xf]
    %v21 = vld [vmem:[%s0 + $0x8] sm:$0xf]
    %v22 = vld [vmem:[%s0 + $0xc] sm:$0xf]
    %v23 = vld [vmem:[%s0 + $0x10] sm:$0xf]
    %v24 = vld [vmem:[%s0 + $0x14] sm:$0xf]
    %v25 = vld [vmem:[%s0 + $0x18] sm:$0xf]
    %v26 = vld [vmem:[%s0 + $0x1c] sm:$0xf]
    %v27 = vld [vmem:[%s0 + $0x20] sm:$0xf]
    %v28 = vld [vmem:[%s0 + $0x24] sm:$0xf]
    %v29 = vld [vmem:[%s0 + $0x28] sm:$0xf]
    %v30 = vld [vmem:[%s0 + $0x2c] sm:$0xf]
    %v31 = vld [vmem:[%s0 + $0x30] sm:$0xf]
    %v32 = vld [vmem:[%s0 + $0x34] sm:$0xf]
    %v33 = vld [vmem:[%s0 + $0x38] sm:$0xf]
    %v34 = vld [vmem:[%s0 + $0x3c] sm:$0xf]
    %v35 = vld [vmem:[%s1] sm:$0xf]
    %v36 = vld [vmem:[%s1 + $0x4] sm:$0xf]
    %v37 = vld [vmem:[%s1 + $0x8] sm:$0xf]
    %v38 = vld [vmem:[%s1 + $0xc] sm:$0xf]
    %v55 = vunpack.c.l.b16 %v19
    %v56 = vunpack.c.l.b16 %v20
    %v57 = vunpack.c.l.b16 %v21
    %v58 = vunpack.c.l.b16 %v22
    %v59 = vunpack.c.l.b16 %v23
    %v60 = vunpack.c.l.b16 %v24
    %v61 = vunpack.c.l.b16 %v25
    %v62 = vunpack.c.l.b16 %v26
    %v63 = vunpack.c.l.b16 %v27
    %v64 = vunpack.c.l.b16 %v28
    %v65 = vunpack.c.l.b16 %v29
    %v66 = vunpack.c.l.b16 %v30
    %v67 = vunpack.c.l.b16 %v31
    %v68 = vunpack.c.l.b16 %v32
    %v69 = vunpack.c.l.b16 %v33
    %v70 = vunpack.c.l.b16 %v34
    %v71 = vpack.c.b16 %v56, %v55
    %v72 = vpack.c.b16 %v58, %v57
    %v73 = vpack.c.b16 %v60, %v59
    %v74 = vpack.c.b16 %v62, %v61
    %v75 = vpack.c.b16 %v64, %v63
    %v76 = vpack.c.b16 %v66, %v65
    %v77 = vpack.c.b16 %v68, %v67
    %v78 = vpack.c.b16 %v70, %v69
    %v83 = vunpack.c.l.b16 %v35
    %v84 = vunpack.c.l.b16 %v36
    %v85 = vunpack.c.l.b16 %v37
    %v86 = vunpack.c.l.b16 %v38
    %v87 = vpack.c.b16 %v84, %v83
    %v88 = vpack.c.b16 %v86, %v85
    %vm91 = vcmask 261120
    %v93 = vsel %vm91, %v71, 0
    %v96 = vsel %vm91, %v72, 0
    %v99 = vsel %vm91, %v73, 0
    %v102 = vsel %vm91, %v74, 0
    %v105 = vsel %vm91, %v75, 0
    %v108 = vsel %vm91, %v76, 0
    %v111 = vsel %vm91, %v77, 0
    %v114 = vsel %vm91, %v78, 0
    %116 = vmatprep.subr.bf16.mxu0 0
    %117 = vmatpush1.bf16.msra.mxu0 %v87
    %118 = vmatprep.subr.bf16.mxu0 0
    %119 = vmatpush1.bf16.msra.mxu0 %v88
    %120 = vmatprep.subr.bf16.mxu0 0
    %121 = vmatpush1.bf16.msra.mxu0 0
    %122 = vmatprep.subr.bf16.mxu0 0
    %123 = vmatpush1.bf16.msra.mxu0 0
    %124 = vmatprep.subr.bf16.mxu0 0
    %125 = vmatpush1.bf16.msra.mxu0 0
    %126 = vmatprep.subr.bf16.mxu0 0
    %127 = vmatpush1.bf16.msra.mxu0 0
    %128 = vmatprep.subr.bf16.mxu0 0
    %129 = vmatpush1.bf16.msra.mxu0 0
    %130 = vmatprep.subr.bf16.mxu0 0
    %131 = vmatpush1.bf16.msra.mxu0 0
    %132 = vmatprep.subr.bf16.mxu0 0
    %133 = vmatpush1.bf16.msra.mxu0 0
    %134 = vmatprep.subr.bf16.mxu0 0
    %135 = vmatpush1.bf16.msra.mxu0 0
    %136 = vmatprep.subr.bf16.mxu0 0
    %137 = vmatpush1.bf16.msra.mxu0 0
    %138 = vmatprep.subr.bf16.mxu0 0
    %139 = vmatpush1.bf16.msra.mxu0 0
    %140 = vmatprep.subr.bf16.mxu0 0
    %141 = vmatpush1.bf16.msra.mxu0 0
    %142 = vmatprep.subr.bf16.mxu0 0
    %143 = vmatpush1.bf16.msra.mxu0 0
    %144 = vmatprep.subr.bf16.mxu0 0
    %145 = vmatpush1.bf16.msra.mxu0 0
    %146 = vmatprep.subr.bf16.mxu0 0
    %147 = vmatpush1.bf16.msra.mxu0 0
    %148 = vmatprep.mubr.bf16.mxu0 0
    %149 = vmatmul.mubr.bf16.gmra.mrb[0].mxu0 %v93
    %v150 = vpop.f32.mrb[0].mxu0
    %v151 = vadd.f32 0.0, %v150
    %v152 = vpop.f32.mrb[0].mxu0
    %v153 = vpop.f32.mrb[0].mxu0
    %v154 = vadd.f32 0.0, %v153
    %v155 = vpop.f32.mrb[0].mxu0
    %156 = vmatprep.mubr.bf16.mxu0 0
    %157 = vmatmul.mubr.bf16.gmra.mrb[0].mxu0 %v96
    %v158 = vpop.f32.mrb[0].mxu0
    %v159 = vadd.f32 0.0, %v158
    %v160 = vpop.f32.mrb[0].mxu0
    %v161 = vpop.f32.mrb[0].mxu0
    %v162 = vadd.f32 0.0, %v161
    %v163 = vpop.f32.mrb[0].mxu0
    %164 = vmatprep.mubr.bf16.mxu0 0
    %165 = vmatmul.mubr.bf16.gmra.mrb[0].mxu0 %v99
    %v166 = vpop.f32.mrb[0].mxu0
    %v167 = vadd.f32 0.0, %v166
    %v168 = vpop.f32.mrb[0].mxu0
    %v169 = vpop.f32.mrb[0].mxu0
    %v170 = vadd.f32 0.0, %v169
    %v171 = vpop.f32.mrb[0].mxu0
    %172 = vmatprep.mubr.bf16.mxu0 0
    %173 = vmatmul.mubr.bf16.gmra.mrb[0].mxu0 %v102
    %v174 = vpop.f32.mrb[0].mxu0
    %v175 = vadd.f32 0.0, %v174
    %v176 = vpop.f32.mrb[0].mxu0
    %v177 = vpop.f32.mrb[0].mxu0
    %v178 = vadd.f32 0.0, %v177
    %v179 = vpop.f32.mrb[0].mxu0
    %180 = vmatprep.mubr.bf16.mxu0 0
    %181 = vmatmul.mubr.bf16.gmra.mrb[0].mxu0 %v105
    %v182 = vpop.f32.mrb[0].mxu0
    %v183 = vadd.f32 0.0, %v182
    %v184 = vpop.f32.mrb[0].mxu0
    %v185 = vpop.f32.mrb[0].mxu0
    %v186 = vadd.f32 0.0, %v185
    %v187 = vpop.f32.mrb[0].mxu0
    %188 = vmatprep.mubr.bf16.mxu0 0
    %189 = vmatmul.mubr.bf16.gmra.mrb[0].mxu0 %v108
    %v190 = vpop.f32.mrb[0].mxu0
    %v191 = vadd.f32 0.0, %v190
    %v192 = vpop.f32.mrb[0].mxu0
    %v193 = vpop.f32.mrb[0].mxu0
    %v194 = vadd.f32 0.0, %v193
    %v195 = vpop.f32.mrb[0].mxu0
    %196 = vmatprep.mubr.bf16.mxu0 0
    %197 = vmatmul.mubr.bf16.gmra.mrb[0].mxu0 %v111
    %v198 = vpop.f32.mrb[0].mxu0
    %v199 = vadd.f32 0.0, %v198
    %v200 = vpop.f32.mrb[0].mxu0
    %v201 = vpop.f32.mrb[0].mxu0
    %v202 = vadd.f32 0.0, %v201
    %v203 = vpop.f32.mrb[0].mxu0
    %204 = vmatprep.mubr.bf16.mxu0 0
    %205 = vmatmul.mubr.bf16.gmra.mrb[0].mxu0 %v114
    %v206 = vpop.f32.mrb[0].mxu0
    %v207 = vadd.f32 0.0, %v206
    %v208 = vpop.f32.mrb[0].mxu0
    %v209 = vpop.f32.mrb[0].mxu0
    %v210 = vadd.f32 0.0, %v209
    %v211 = vpop.f32.mrb[0].mxu0
    %212 = vdwg.mxu0
    %v213 = vpack.c.bf16 %v154, %v151
    %v214 = vpack.c.bf16 %v162, %v159
    %v215 = vpack.c.bf16 %v170, %v167
    %v216 = vpack.c.bf16 %v178, %v175
    %v217 = vpack.c.bf16 %v186, %v183
    %v218 = vpack.c.bf16 %v194, %v191
    %v219 = vpack.c.bf16 %v202, %v199
    %v220 = vpack.c.bf16 %v210, %v207
    %v229 = vunpack.c.l.b16 %v213
    %v230 = vunpack.c.h.b16 %v213
    %v231 = vunpack.c.l.b16 %v214
    %v232 = vunpack.c.h.b16 %v214
    %v233 = vunpack.c.l.b16 %v215
    %v234 = vunpack.c.h.b16 %v215
    %v235 = vunpack.c.l.b16 %v216
    %v236 = vunpack.c.h.b16 %v216
    %v237 = vunpack.c.l.b16 %v217
    %v238 = vunpack.c.h.b16 %v217
    %v239 = vunpack.c.l.b16 %v218
    %v240 = vunpack.c.h.b16 %v218
    %v241 = vunpack.c.l.b16 %v219
    %v242 = vunpack.c.h.b16 %v219
    %v243 = vunpack.c.l.b16 %v220
    %v244 = vunpack.c.h.b16 %v220
    %v245 = vpack.c.b16 %v229, %v229
    %v246 = vpack.c.b16 %v230, %v230
    %v247 = vpack.c.b16 %v231, %v231
    %v248 = vpack.c.b16 %v232, %v232
    %v249 = vpack.c.b16 %v233, %v233
    %v250 = vpack.c.b16 %v234, %v234
    %v251 = vpack.c.b16 %v235, %v235
    %v252 = vpack.c.b16 %v236, %v236
    %v253 = vpack.c.b16 %v237, %v237
    %v254 = vpack.c.b16 %v238, %v238
    %v255 = vpack.c.b16 %v239, %v239
    %v256 = vpack.c.b16 %v240, %v240
    %v257 = vpack.c.b16 %v241, %v241
    %v258 = vpack.c.b16 %v242, %v242
    %v259 = vpack.c.b16 %v243, %v243
    %v260 = vpack.c.b16 %v244, %v244
    %277 = vst [vmem:[#allocation2] sm:$0xf] %v245
    %278 = vst [vmem:[#allocation2 + $0x4] sm:$0xf] %v246
    %279 = vst [vmem:[#allocation2 + $0x8] sm:$0xf] %v247
    %280 = vst [vmem:[#allocation2 + $0xc] sm:$0xf] %v248
    %281 = vst [vmem:[#allocation2 + $0x10] sm:$0xf] %v249
    %282 = vst [vmem:[#allocation2 + $0x14] sm:$0xf] %v250
    %283 = vst [vmem:[#allocation2 + $0x18] sm:$0xf] %v251
    %284 = vst [vmem:[#allocation2 + $0x1c] sm:$0xf] %v252
    %285 = vst [vmem:[#allocation2 + $0x20] sm:$0xf] %v253
    %286 = vst [vmem:[#allocation2 + $0x24] sm:$0xf] %v254
    %287 = vst [vmem:[#allocation2 + $0x28] sm:$0xf] %v255
    %288 = vst [vmem:[#allocation2 + $0x2c] sm:$0xf] %v256
    %289 = vst [vmem:[#allocation2 + $0x30] sm:$0xf] %v257
    %290 = vst [vmem:[#allocation2 + $0x34] sm:$0xf] %v258
    %291 = vst [vmem:[#allocation2 + $0x38] sm:$0xf] %v259
    %292 = vst [vmem:[#allocation2 + $0x3c] sm:$0xf] %v260
    %v293 = vld [vmem:[%s2] sm:$0x3]
    %294 = vmatprep.subr.mxu0 0.0
    %295 = vmatpush1.xpose.msra.mxu0 %v151
    %296 = vmatprep.subr.mxu0 0.0
    %297 = vmatpush1.xpose.msra.mxu0 %v154
    %298 = vmatprep.subr.mxu0 0.0
    %299 = vmatpush1.xpose.msra.mxu0 %v159
    %300 = vmatprep.subr.mxu0 0.0
    %301 = vmatpush1.xpose.msra.mxu0 %v162
    %302 = vmatprep.subr.mxu0 0.0
    %303 = vmatpush1.xpose.msra.mxu0 %v167
    %304 = vmatprep.subr.mxu0 0.0
    %305 = vmatpush1.xpose.msra.mxu0 %v170
    %306 = vmatprep.subr.mxu0 0.0
    %307 = vmatpush1.xpose.msra.mxu0 %v175
    %308 = vmatprep.subr.mxu0 0.0
    %309 = vmatpush1.xpose.msra.mxu0 %v178
    %310 = vmatprep.subr.mxu0 0.0
    %311 = vmatpush1.xpose.msra.mxu0 %v183
    %312 = vmatprep.subr.mxu0 0.0
    %313 = vmatpush1.xpose.msra.mxu0 %v186
    %314 = vmatprep.subr.mxu0 0.0
    %315 = vmatpush1.xpose.msra.mxu0 %v191
    %316 = vmatprep.subr.mxu0 0.0
    %317 = vmatpush1.xpose.msra.mxu0 %v194
    %318 = vmatprep.subr.mxu0 0.0
    %319 = vmatpush1.xpose.msra.mxu0 %v199
    %320 = vmatprep.subr.mxu0 0.0
    %321 = vmatpush1.xpose.msra.mxu0 %v202
    %322 = vmatprep.subr.mxu0 0.0
    %323 = vmatpush1.xpose.msra.mxu0 %v207
    %324 = vmatprep.subr.mxu0 0.0
    %325 = vmatpush1.xpose.msra.mxu0 %v210
    %326 = vmatprep.subr.mxu0 0.0
    %327 = vmatpush1.xpose.msra.mxu0 0.0
    %328 = vmatprep.subr.mxu0 0.0
    %329 = vmatpush1.xpose.msra.mxu0 0.0
    %330 = vmatprep.subr.mxu0 0.0
    %331 = vmatpush1.xpose.msra.mxu0 0.0
    %332 = vmatprep.subr.mxu0 0.0
    %333 = vmatpush1.xpose.msra.mxu0 0.0
    %334 = vmatprep.subr.mxu0 0.0
    %335 = vmatpush1.xpose.msra.mxu0 0.0
    %336 = vmatprep.subr.mxu0 0.0
    %337 = vmatpush1.xpose.msra.mxu0 0.0
    %338 = vmatprep.subr.mxu0 0.0
    %339 = vmatpush1.xpose.msra.mxu0 0.0
    %340 = vmatprep.subr.mxu0 0.0
    %341 = vmatpush1.xpose.msra.mxu0 0.0
    %342 = vmatprep.subr.mxu0 0.0
    %343 = vmatpush1.xpose.msra.mxu0 0.0
    %344 = vmatprep.subr.mxu0 0.0
    %345 = vmatpush1.xpose.msra.mxu0 0.0
    %346 = vmatprep.subr.mxu0 0.0
    %347 = vmatpush1.xpose.msra.mxu0 0.0
    %348 = vmatprep.subr.mxu0 0.0
    %349 = vmatpush1.xpose.msra.mxu0 0.0
    %350 = vmatprep.subr.mxu0 0.0
    %351 = vmatpush1.xpose.msra.mxu0 0.0
    %352 = vmatprep.subr.mxu0 0.0
    %353 = vmatpush1.xpose.msra.mxu0 0.0
    %354 = vmatprep.subr.mxu0 0.0
    %355 = vmatpush1.xpose.msra.mxu0 0.0
    %356 = vmatprep.subr.mxu0 0.0
    %357 = vmatpush1.xpose.msra.mxu0 0.0
    %358 = vmatprep.mubr.f32.mxu0 0.0
    %359 = vmatmul.mubr.f32.gmra.mrb[0].mxu0 %v293
    %v360 = vpop.f32.mrb[0].mxu0
    %v361 = vadd.f32 0.0, %v360
    %v362 = vpop.f32.mrb[0].mxu0
    %363 = vdwg.mxu0
    %364 = vst [vmem:[#allocation4] sm:$0x3] %v361
    // Predicated region
    $region14: #{tpu_custom_call.1} parent=1 // pred_check
      _
    $region15: #{tpu_custom_call.1} parent=1 // pred_check_branch
      %366 = sbr.rel (0) target = $region17
    $region16: #{tpu_custom_call.1} parent=1 // pred_region
      %s368 = ssub.s32 1024, 1024
      %369 = vsyncadd [#allocation3], %s368
      %s370 = sshll.u32 [#allocation2], 4
      %s371 = int_to_ptr.vmem [resolvable:$true] %s370
      %376 = dma.vmem_to_hbm [thread:$0]  %s371, 1024, %s3, [#allocation3], 64, 64, 4
    $region17: #{tpu_custom_call.1} parent=1 // pred_fallthru
      _
    // Predicated region
    $region18: #{tpu_custom_call.1} parent=1 // pred_check
      _
    $region19: #{tpu_custom_call.1} parent=1 // pred_check_branch
      %378 = sbr.rel (0) target = $region21
    $region20: #{tpu_custom_call.1} parent=1 // pred_region
      %s380 = ssub.s32 32, 32
      %381 = vsyncadd [#allocation5], %s380
      %s383 = sshll.u32 [#allocation4], 4
      %s384 = int_to_ptr.vmem [resolvable:$true] %s383
      %386 = dma.vmem_to_hbm [thread:$0]  %s384, 32, %s4, [#allocation5]
    $region21: #{tpu_custom_call.1} parent=1 // pred_fallthru
      _
    // Predicated region
    $region22: #{tpu_custom_call.1} parent=1 // pred_check
      _
    $region23: #{tpu_custom_call.1} parent=1 // pred_check_branch
      %388 = sbr.rel (0) target = $region25
    $region24: #{tpu_custom_call.1} parent=1 // pred_region
      %389 = dma.done [#allocation3], 1024
    $region25: #{tpu_custom_call.1} parent=1 // pred_fallthru
      _
    // Predicated region
    $region26: #{tpu_custom_call.1} parent=1 // pred_check
      _
    $region27: #{tpu_custom_call.1} parent=1 // pred_check_branch
      %391 = sbr.rel (0) target = $region29
    $region28: #{tpu_custom_call.1} parent=1 // pred_region
      %392 = dma.done [#allocation5], 32
    $region29: #{tpu_custom_call.1} parent=1 // pred_fallthru
      _
    %393 = vsyncpa [#allocation3], 1
    %394 = vsyncpa [#allocation5], 1

</llo_original>
